<compile_context>
chip_gen: v5e
topology: v5e:2x2
jax: 0.10.0
libtpu: 0.0.40
codegen_flags: <defaults>
</compile_context>

<pallas_src>
import jax
import jax.numpy as jnp
from jax.experimental import pallas as pl
from jax.experimental.pallas import tpu as pltpu

_LANE = 128


def _round_up(n, m):
    return ((n + m - 1) // m) * m


# ---------------------------------------------------------------------------
# Kernel: one (TM, F) tile of observations -> (TM, P) lane-dense mean slab.
# Weights w1:(F,P), w2:(P,P), w3:(P,P) (bf16, zero-padded), biases packed (8,P) f32.
# ---------------------------------------------------------------------------
def _actor_kernel(x_ref, w1_ref, w2_ref, w3_ref, b_ref, mean_ref):
    # Layer 1: MXU matmul with f32 accumulation, bias + ReLU on the VPU in f32.
    h = jnp.dot(x_ref[...], w1_ref[...], preferred_element_type=jnp.float32)
    h = jnp.maximum(h + b_ref[0:1, :], 0.0)
    # Layer 2 (padded hidden lanes are exactly zero, so they contribute nothing).
    h = jnp.dot(h.astype(w2_ref.dtype), w2_ref[...],
                preferred_element_type=jnp.float32)
    h = jnp.maximum(h + b_ref[1:2, :], 0.0)
    # Layer 3 (mean head): lane-dense (TM, P) store; real act_dim columns are
    # sliced out by the wrapper.
    out = jnp.dot(h.astype(w3_ref.dtype), w3_ref[...],
                  preferred_element_type=jnp.float32)
    mean_ref[...] = (out + b_ref[2:3, :]).astype(mean_ref.dtype)


# ---------------------------------------------------------------------------
# Parameter packing (done once, outside the hot path): pad to 128 lanes,
# cast weights to bf16, pack biases into a single lane-dense f32 array.
# ---------------------------------------------------------------------------
def pack_actor_params(params, compute_dtype=jnp.bfloat16):
    w1, b1, w2, b2, w3, b3 = params
    in_dim, hidden = w1.shape
    act_dim = w3.shape[1]
    p = _round_up(max(hidden, act_dim), _LANE)

    w1p = jnp.zeros((in_dim, p), compute_dtype).at[:, :hidden].set(
        w1.astype(compute_dtype))
    w2p = jnp.zeros((p, p), compute_dtype).at[:hidden, :hidden].set(
        w2.astype(compute_dtype))
    w3p = jnp.zeros((p, p), compute_dtype).at[:hidden, :act_dim].set(
        w3.astype(compute_dtype))
    bp = (jnp.zeros((8, p), jnp.float32)
          .at[0, :hidden].set(b1[0])
          .at[1, :hidden].set(b2[0])
          .at[2, :act_dim].set(b3[0]))
    return (w1p, w2p, w3p, bp, int(act_dim))


# ---------------------------------------------------------------------------
# Forward: returns (mean, cov_diag) of the policy's MultivariateNormal.
# ---------------------------------------------------------------------------
def actor_forward(x, packed_params, block_rows=256):
    w1p, w2p, w3p, bp, act_dim = packed_params
    B, F = x.shape
    P = w1p.shape[1]
    compute_dtype = w1p.dtype

    # Batch tile: multiple of 16 sublanes (bf16 packing); cap at block_rows.
    tm = min(block_rows, _round_up(B, 16))
    b_pad = _round_up(B, tm)

    xp = x.astype(compute_dtype)
    if b_pad != B:
        xp = jnp.pad(xp, ((0, b_pad - B), (0, 0)))

    grid = (b_pad // tm,)

    mean_pad = pl.pallas_call(
        _actor_kernel,
        out_shape=jax.ShapeDtypeStruct((b_pad, P), jnp.float32),
        grid=grid,
        in_specs=[
            # Activations: streamed tile per grid step.
            pl.BlockSpec((tm, F), lambda i: (i, 0)),
            # Weights & packed biases: same block every step -> VMEM-resident.
            pl.BlockSpec(w1p.shape, lambda i: (0, 0)),
            pl.BlockSpec(w2p.shape, lambda i: (0, 0)),
            pl.BlockSpec(w3p.shape, lambda i: (0, 0)),
            pl.BlockSpec(bp.shape, lambda i: (0, 0)),
        ],
        out_specs=pl.BlockSpec((tm, P), lambda i: (i, 0)),
        compiler_params=pltpu.CompilerParams(
            dimension_semantics=("parallel",)),
    )(xp, w1p, w2p, w3p, bp)

    mean = mean_pad[:B, :act_dim]
    # TODO(synk): torch.distributions.MultivariateNormal has no Pallas
    # equivalent; return its parameters (mean, diagonal covariance = 0.5).
    cov_diag = jnp.full((act_dim,), 0.5, dtype=jnp.float32)
    return mean, cov_diag


# ---------------------------------------------------------------------------
# Init + references
# ---------------------------------------------------------------------------
def init_actor_params(key, input_size, hidden_size, output_size):
    """Deterministic init mimicking nn.Linear's default U(-1/sqrt(fan_in), ...)."""
    ks = jax.random.split(key, 6)

    def linear(kw, kb, fan_in, fan_out):
        bound = 1.0 / jnp.sqrt(fan_in)
        # store weight as (in, out) = PyTorch weight.T
        w = jax.random.uniform(kw, (fan_in, fan_out), jnp.float32, -bound, bound)
        b = jax.random.uniform(kb, (1, fan_out), jnp.float32, -bound, bound)
        return w, b

    w1, b1 = linear(ks[0], ks[1], input_size, hidden_size)
    w2, b2 = linear(ks[2], ks[3], hidden_size, hidden_size)
    w3, b3 = linear(ks[4], ks[5], hidden_size, output_size)
    return (w1, b1, w2, b2, w3, b3)


def actor_reference_f32(x, params):
    """Pure-JAX f32 reference of the PyTorch forward (mean only)."""
    w1, b1, w2, b2, w3, b3 = params
    h = jnp.maximum(x @ w1 + b1, 0.0)
    h = jnp.maximum(h @ w2 + b2, 0.0)
    return h @ w3 + b3


def actor_reference_bf16(x, params):
    """Pure-JAX reference with the same bf16-in / f32-accumulate arithmetic."""
    w1, b1, w2, b2, w3, b3 = params
    cd = jnp.bfloat16
    h = jnp.dot(x.astype(cd), w1.astype(cd),
                preferred_element_type=jnp.float32) + b1
    h = jnp.maximum(h, 0.0)
    h = jnp.dot(h.astype(cd), w2.astype(cd),
                preferred_element_type=jnp.float32) + b2
    h = jnp.maximum(h, 0.0)
    return jnp.dot(h.astype(cd), w3.astype(cd),
                   preferred_element_type=jnp.float32) + b3


if __name__ == "__main__":
    # LunarLanderContinuous-v2: obs dim 8, action dim 2.
    INPUT_SIZE, HIDDEN_SIZE, OUTPUT_SIZE = 8, 64, 2

    key = jax.random.PRNGKey(0)
    k_params, k_x_small, k_x_big = jax.random.split(key, 3)
    params = init_actor_params(k_params, INPUT_SIZE, HIDDEN_SIZE, OUTPUT_SIZE)
    packed = pack_actor_params(params)

    ok = True
    # Small batch (inference-style) and rollout-sized batch (multi-step grid).
    for k_x, batch in ((k_x_small, 8), (k_x_big, 512)):
        x = jax.random.normal(k_x, (batch, INPUT_SIZE), dtype=jnp.float32)

        mean, cov_diag = actor_forward(x, packed)
        mean = jax.block_until_ready(mean)
        cov_diag = jax.block_until_ready(cov_diag)

        assert mean.shape == (batch, OUTPUT_SIZE)
        assert cov_diag.shape == (OUTPUT_SIZE,)
        assert mean.dtype == jnp.float32

        ref_bf16 = actor_reference_bf16(x, params)
        ref_f32 = actor_reference_f32(x, params)
        ok &= bool(jnp.allclose(mean, ref_bf16, atol=1e-3, rtol=1e-3))
        ok &= bool(jnp.allclose(mean, ref_f32, atol=5e-2, rtol=5e-2))
        ok &= bool(jnp.allclose(cov_diag, 0.5))

    assert ok, "kernel output mismatch vs reference"
    print("KERNEL_OK")
</pallas_src>

<mosaic_0001>
module attributes {stable_mosaic.version = 11 : i64} {
  func.func @_actor_kernel(%arg0: i32, %arg1: memref<16x8xbf16, #tpu.memory_space<vmem>>, %arg2: memref<8x128xbf16, #tpu.memory_space<vmem>>, %arg3: memref<128x128xbf16, #tpu.memory_space<vmem>>, %arg4: memref<128x128xbf16, #tpu.memory_space<vmem>>, %arg5: memref<8x128xf32, #tpu.memory_space<vmem>>, %arg6: memref<16x128xf32, #tpu.memory_space<vmem>>) attributes {dimension_semantics = [#tpu.dimension_semantics<parallel>], iteration_bounds = array<i64: 1>, scalar_prefetch = 0 : i64, scratch_operands = 0 : i64, tpu.core_type = #tpu.core_type<tc>, window_params = [{transform_indices = @transform_0, window_bounds = array<i64: 16, 8>}, {pipeline_mode = #tpu.pipeline_mode<synchronous>, transform_indices = @transform_1, window_bounds = array<i64: 8, 128>}, {pipeline_mode = #tpu.pipeline_mode<synchronous>, transform_indices = @transform_2, window_bounds = array<i64: 128, 128>}, {pipeline_mode = #tpu.pipeline_mode<synchronous>, transform_indices = @transform_3, window_bounds = array<i64: 128, 128>}, {pipeline_mode = #tpu.pipeline_mode<synchronous>, transform_indices = @transform_4, window_bounds = array<i64: 8, 128>}, {transform_indices = @transform_5, window_bounds = array<i64: 16, 128>}]} {
    %c0 = arith.constant 0 : index
    %c0_0 = arith.constant 0 : index
    %0 = vector.load %arg1[%c0, %c0_0] : memref<16x8xbf16, #tpu.memory_space<vmem>>, vector<16x8xbf16>
    %c0_1 = arith.constant 0 : index
    %c0_2 = arith.constant 0 : index
    %1 = vector.load %arg2[%c0_1, %c0_2] : memref<8x128xbf16, #tpu.memory_space<vmem>>, vector<8x128xbf16>
    %cst = arith.constant dense<0.000000e+00> : vector<16x128xf32>
    %2 = tpu.matmul %0, %1, %cst {dimension_numbers = #tpu.dot_dimension_numbers<[1], [0], [0], [1], [0, 0, 1, 1], [], []>} : vector<16x8xbf16>, vector<8x128xbf16>, vector<16x128xf32> -> vector<16x128xf32>
    %c0_3 = arith.constant 0 : index
    %c0_4 = arith.constant 0 : index
    %3 = vector.load %arg5[%c0_3, %c0_4] : memref<8x128xf32, #tpu.memory_space<vmem>>, vector<1x128xf32>
    %4 = vector.broadcast %3 : vector<1x128xf32> to vector<16x128xf32>
    %5 = arith.addf %2, %4 : vector<16x128xf32>
    %cst_5 = arith.constant 0.000000e+00 : f32
    %6 = vector.broadcast %cst_5 : f32 to vector<16x128xf32>
    %7 = arith.maximumf %5, %6 : vector<16x128xf32>
    %8 = arith.truncf %7 : vector<16x128xf32> to vector<16x128xbf16>
    %c0_6 = arith.constant 0 : index
    %c0_7 = arith.constant 0 : index
    %9 = vector.load %arg3[%c0_6, %c0_7] : memref<128x128xbf16, #tpu.memory_space<vmem>>, vector<128x128xbf16>
    %cst_8 = arith.constant dense<0.000000e+00> : vector<16x128xf32>
    %10 = tpu.matmul %8, %9, %cst_8 {dimension_numbers = #tpu.dot_dimension_numbers<[1], [0], [0], [1], [0, 0, 1, 1], [], []>} : vector<16x128xbf16>, vector<128x128xbf16>, vector<16x128xf32> -> vector<16x128xf32>
    %c1 = arith.constant 1 : index
    %c0_9 = arith.constant 0 : index
    %11 = vector.load %arg5[%c1, %c0_9] : memref<8x128xf32, #tpu.memory_space<vmem>>, vector<1x128xf32>
    %12 = vector.broadcast %11 : vector<1x128xf32> to vector<16x128xf32>
    %13 = arith.addf %10, %12 : vector<16x128xf32>
    %cst_10 = arith.constant 0.000000e+00 : f32
    %14 = vector.broadcast %cst_10 : f32 to vector<16x128xf32>
    %15 = arith.maximumf %13, %14 : vector<16x128xf32>
    %16 = arith.truncf %15 : vector<16x128xf32> to vector<16x128xbf16>
    %c0_11 = arith.constant 0 : index
    %c0_12 = arith.constant 0 : index
    %17 = vector.load %arg4[%c0_11, %c0_12] : memref<128x128xbf16, #tpu.memory_space<vmem>>, vector<128x128xbf16>
    %cst_13 = arith.constant dense<0.000000e+00> : vector<16x128xf32>
    %18 = tpu.matmul %16, %17, %cst_13 {dimension_numbers = #tpu.dot_dimension_numbers<[1], [0], [0], [1], [0, 0, 1, 1], [], []>} : vector<16x128xbf16>, vector<128x128xbf16>, vector<16x128xf32> -> vector<16x128xf32>
    %c2 = arith.constant 2 : index
    %c0_14 = arith.constant 0 : index
    %19 = vector.load %arg5[%c2, %c0_14] : memref<8x128xf32, #tpu.memory_space<vmem>>, vector<1x128xf32>
    %20 = vector.broadcast %19 : vector<1x128xf32> to vector<16x128xf32>
    %21 = arith.addf %18, %20 : vector<16x128xf32>
    %c0_15 = arith.constant 0 : index
    %c0_16 = arith.constant 0 : index
    %22 = vector.load %arg6[%c0_15, %c0_16] : memref<16x128xf32, #tpu.memory_space<vmem>>, vector<16x128xf32>
    tpu.vector_store %arg6[%c0_15, %c0_16], %21 {strides = array<i32>} : memref<16x128xf32, #tpu.memory_space<vmem>>, vector<16x128xf32>,
    return
  }
  func.func @transform_0(%arg0: i32) -> (i32, i32) {
    %c0_i32 = arith.constant 0 : i32
    %c0_i32_0 = arith.constant 0 : i32
    return %arg0, %c0_i32 : i32, i32
  }
  func.func @transform_1(%arg0: i32) -> (i32, i32) {
    %c0_i32 = arith.constant 0 : i32
    %c0_i32_0 = arith.constant 0 : i32
    %c0_i32_1 = arith.constant 0 : i32
    return %c0_i32, %c0_i32_0 : i32, i32
  }
  func.func @transform_2(%arg0: i32) -> (i32, i32) {
    %c0_i32 = arith.constant 0 : i32
    %c0_i32_0 = arith.constant 0 : i32
    %c0_i32_1 = arith.constant 0 : i32
    return %c0_i32, %c0_i32_0 : i32, i32
  }
  func.func @transform_3(%arg0: i32) -> (i32, i32) {
    %c0_i32 = arith.constant 0 : i32
    %c0_i32_0 = arith.constant 0 : i32
    %c0_i32_1 = arith.constant 0 : i32
    return %c0_i32, %c0_i32_0 : i32, i32
  }
  func.func @transform_4(%arg0: i32) -> (i32, i32) {
    %c0_i32 = arith.constant 0 : i32
    %c0_i32_0 = arith.constant 0 : i32
    %c0_i32_1 = arith.constant 0 : i32
    return %c0_i32, %c0_i32_0 : i32, i32
  }
  func.func @transform_5(%arg0: i32) -> (i32, i32) {
    %c0_i32 = arith.constant 0 : i32
    %c0_i32_0 = arith.constant 0 : i32
    return %arg0, %c0_i32 : i32, i32
  }
}

</mosaic_0001>

<llo_original>
// kernel: tpu_custom_call.1
$region0: #{tpu_custom_call.1}
  #allocation0 [shape = 'u32[]', space=smem, size = 0x4, offset = 0x4, fixed_abs, tag = 'smem constant byte address 0x4 - core index']
  #allocation1 [shape = 'u32[72,128]{1,0:T(1,128)}', space=vmem, size = 0x9000, scoped, tag = 'internal scratch']
  %s0 = inlined_call_operand.vmem [shape: bf16[16,8], index: 0, kind: input, shape index: {}]
  %s1 = inlined_call_operand.vmem [shape: bf16[8,128], index: 1, kind: input, shape index: {}]
  %s2 = inlined_call_operand.hbm [shape: bf16[128,128], index: 2, kind: input, shape index: {}]
  %s3 = inlined_call_operand.hbm [shape: bf16[128,128], index: 3, kind: input, shape index: {}]
  %s4 = inlined_call_operand.vmem [shape: f32[8,128], index: 4, kind: input, shape index: {}]
  %s5 = inlined_call_operand.hbm [shape: f32[16,128], index: 5, kind: output, shape index: {}]
  %s6 = sld [smem:[#allocation0]]
  $region38: #{tpu_custom_call.1} parent=0
    _
  %s8 = ssub.s32 1, %s6
  %s9 = scalar_select 0, %s8, %s6
  $region1: #{tpu_custom_call.1} parent=0
    #allocation2 [shape = 'u8[32768]{0}', space=vmem, size = 0x8000, scoped, tag = 'input window, operand 2, single buffered']
    #allocation3 [shape = 's32[1]{0}', space=sflag, size = 0x4, scoped, tag = 'scoped memory for tpu_custom_call.1']
    #allocation4 [shape = 's32[1]{0}', space=sflag, size = 0x4, scoped, tag = 'scoped memory for tpu_custom_call.1']
    #allocation5 [shape = 'u8[32768]{0}', space=vmem, size = 0x8000, scoped, tag = 'input window, operand 3, single buffered']
    #allocation6 [shape = 's32[1]{0}', space=sflag, size = 0x4, scoped, tag = 'scoped memory for tpu_custom_call.1']
    #allocation7 [shape = 'u8[8192]{0}', space=vmem, size = 0x2000, scoped, tag = 'output window, operand 0, single buffered']
    %10 = vsyncpa [#allocation3], 0
    %11 = vsyncpa [#allocation6], 0
    %12 = vsyncpa [#allocation4], 0
    // Predicated region
    $region2: #{tpu_custom_call.1} parent=1 // pred_check
      _
    $region3: #{tpu_custom_call.1} parent=1 // pred_check_branch
      %14 = sbr.rel (0) target = $region5
    $region4: #{tpu_custom_call.1} parent=1 // pred_region
      _
    $region5: #{tpu_custom_call.1} parent=1 // pred_fallthru
      _
    // Predicated region
    $region6: #{tpu_custom_call.1} parent=1 // pred_check
      _
    $region7: #{tpu_custom_call.1} parent=1 // pred_check_branch
      %16 = sbr.rel (0) target = $region9
    $region8: #{tpu_custom_call.1} parent=1 // pred_region
      _
    $region9: #{tpu_custom_call.1} parent=1 // pred_fallthru
      _
    // Predicated region
    $region10: #{tpu_custom_call.1} parent=1 // pred_check
      _
    $region11: #{tpu_custom_call.1} parent=1 // pred_check_branch
      %18 = sbr.rel (0) target = $region13
    $region12: #{tpu_custom_call.1} parent=1 // pred_region
      %20 = vsyncadd [#allocation3], 0
      %s21 = sshll.u32 %s2, 4
      %s22 = int_to_ptr.hbm [resolvable:$true] %s21
      %s23 = sshll.u32 [#allocation2], 4
      %s24 = int_to_ptr.vmem [resolvable:$true] %s23
      %29 = dma.hbm_to_vmem [thread:$0]  %s22, 1024, %s24, [#allocation3], 64, 64, 4
    $region13: #{tpu_custom_call.1} parent=1 // pred_fallthru
      _
    // Predicated region
    $region14: #{tpu_custom_call.1} parent=1 // pred_check
      _
    $region15: #{tpu_custom_call.1} parent=1 // pred_check_branch
      %31 = sbr.rel (0) target = $region17
    $region16: #{tpu_custom_call.1} parent=1 // pred_region
      %33 = vsyncadd [#allocation6], 0
      %s34 = sshll.u32 %s3, 4
      %s35 = int_to_ptr.hbm [resolvable:$true] %s34
      %s36 = sshll.u32 [#allocation5], 4
      %s37 = int_to_ptr.vmem [resolvable:$true] %s36
      %42 = dma.hbm_to_vmem [thread:$0]  %s35, 1024, %s37, [#allocation6], 64, 64, 4
    $region17: #{tpu_custom_call.1} parent=1 // pred_fallthru
      _
    // Predicated region
    $region18: #{tpu_custom_call.1} parent=1 // pred_check
      _
    $region19: #{tpu_custom_call.1} parent=1 // pred_check_branch
      %44 = sbr.rel (0) target = $region21
    $region20: #{tpu_custom_call.1} parent=1 // pred_region
      _
    $region21: #{tpu_custom_call.1} parent=1 // pred_fallthru
      _
    // Predicated region
    $region22: #{tpu_custom_call.1} parent=1 // pred_check
      _
    $region23: #{tpu_custom_call.1} parent=1 // pred_check_branch
      %46 = sbr.rel (0) target = $region25
    $region24: #{tpu_custom_call.1} parent=1 // pred_region
      %48 = dma.done [#allocation3], 1024
    $region25: #{tpu_custom_call.1} parent=1 // pred_fallthru
      _
    // Predicated region
    $region26: #{tpu_custom_call.1} parent=1 // pred_check
      _
    $region27: #{tpu_custom_call.1} parent=1 // pred_check_branch
      %50 = sbr.rel (0) target = $region29
    $region28: #{tpu_custom_call.1} parent=1 // pred_region
      %52 = dma.done [#allocation6], 1024
    $region29: #{tpu_custom_call.1} parent=1 // pred_fallthru
      _
    %v54 = vld [vmem:[%s0] sm:$0xf]
    %v55 = vld [vmem:[%s0 + $0x4] sm:$0xf]
    %v56 = vld [vmem:[%s1] sm:$0xf]
    %v57 = vld [vmem:[%s4] sm:$0x1]
    %v58 = vperm.slane %v57, 0
    %v61 = vunpack.c.l.b16 %v54
    %v62 = vunpack.c.l.b16 %v55
    %v63 = vpack.c.b16 %v62, %v61
    %vm64 = vcmask 64512
    %v66 = vsel %vm64, %v63, 0
    %vm68 = vcmask 1043456
    %v70 = vsel %vm68, %v56, 0
    %72 = vmatpush.bf16.msra.mxu0 0
    %73 = vmatpush.bf16.msra.mxu0 0
    %74 = vmatpush.bf16.msra.mxu0 0
    %75 = vmatpush.bf16.msra.mxu0 0
    %76 = vmatpush.bf16.msra.mxu0 0
    %77 = vmatpush.bf16.msra.mxu0 0
    %78 = vmatpush.bf16.msra.mxu0 0
    %79 = vmatpush.bf16.msra.mxu0 %v70
    %80 = vmatmul.bf16.gmra.mxu0 %v66
    %v81 = vpop.f32.mrf.mxu0
    %v82 = vadd.f32 %v58, %v81
    %v83 = vpop.f32.mrf.mxu0
    %v84 = vadd.f32 %v58, %v83
    %85 = vdwg.mxu0
    %v86 = vmax.f32 %v82, 0.0
    %v87 = vmax.f32 %v84, 0.0
    %v88 = vpack.c.bf16 %v87, %v86
    %v89 = vld [vmem:[#allocation2] sm:$0xf]
    %v90 = vld [vmem:[#allocation2 + $0x4] sm:$0xf]
    %v91 = vld [vmem:[#allocation2 + $0x8] sm:$0xf]
    %v92 = vld [vmem:[#allocation2 + $0xc] sm:$0xf]
    %v93 = vld [vmem:[#allocation2 + $0x10] sm:$0xf]
    %v94 = vld [vmem:[#allocation2 + $0x14] sm:$0xf]
    %v95 = vld [vmem:[#allocation2 + $0x18] sm:$0xf]
    %v96 = vld [vmem:[#allocation2 + $0x1c] sm:$0xf]
    %v97 = vld [vmem:[#allocation2 + $0x20] sm:$0xf]
    %v98 = vld [vmem:[#allocation2 + $0x24] sm:$0xf]
    %v99 = vld [vmem:[#allocation2 + $0x28] sm:$0xf]
    %v100 = vld [vmem:[#allocation2 + $0x2c] sm:$0xf]
    %v101 = vld [vmem:[#allocation2 + $0x30] sm:$0xf]
    %v102 = vld [vmem:[#allocation2 + $0x34] sm:$0xf]
    %v103 = vld [vmem:[#allocation2 + $0x38] sm:$0xf]
    %v104 = vld [vmem:[#allocation2 + $0x3c] sm:$0xf]
    %v105 = vld [vmem:[%s4 + $0x1] sm:$0x1]
    %v106 = vperm.slane %v105, 0
    %v123 = vunpack.c.l.b16 %v89
    %v124 = vunpack.c.l.b16 %v90
    %v125 = vunpack.c.l.b16 %v91
    %v126 = vunpack.c.l.b16 %v92
    %v127 = vunpack.c.l.b16 %v93
    %v128 = vunpack.c.l.b16 %v94
    %v129 = vunpack.c.l.b16 %v95
    %v130 = vunpack.c.l.b16 %v96
    %v131 = vunpack.c.l.b16 %v97
    %v132 = vunpack.c.l.b16 %v98
    %v133 = vunpack.c.l.b16 %v99
    %v134 = vunpack.c.l.b16 %v100
    %v135 = vunpack.c.l.b16 %v101
    %v136 = vunpack.c.l.b16 %v102
    %v137 = vunpack.c.l.b16 %v103
    %v138 = vunpack.c.l.b16 %v104
    %v139 = vpack.c.b16 %v124, %v123
    %v140 = vpack.c.b16 %v126, %v125
    %v141 = vpack.c.b16 %v128, %v127
    %v142 = vpack.c.b16 %v130, %v129
    %v143 = vpack.c.b16 %v132, %v131
    %v144 = vpack.c.b16 %v134, %v133
    %v145 = vpack.c.b16 %v136, %v135
    %v146 = vpack.c.b16 %v138, %v137
    %155 = vmatpush.bf16.msra.mxu0 %v146
    %156 = vmatpush.bf16.msra.mxu0 %v145
    %157 = vmatpush.bf16.msra.mxu0 %v144
    %158 = vmatpush.bf16.msra.mxu0 %v143
    %159 = vmatpush.bf16.msra.mxu0 %v142
    %160 = vmatpush.bf16.msra.mxu0 %v141
    %161 = vmatpush.bf16.msra.mxu0 %v140
    %162 = vmatpush.bf16.msra.mxu0 %v139
    %163 = vmatmul.bf16.gmra.mxu0 %v88
    %v164 = vpop.f32.mrf.mxu0
    %v165 = vadd.f32 %v106, %v164
    %v166 = vpop.f32.mrf.mxu0
    %v167 = vadd.f32 %v106, %v166
    %168 = vdwg.mxu0
    %v169 = vmax.f32 %v165, 0.0
    %v170 = vmax.f32 %v167, 0.0
    %v171 = vpack.c.bf16 %v170, %v169
    %v172 = vld [vmem:[#allocation5] sm:$0xf]
    %v173 = vld [vmem:[#allocation5 + $0x4] sm:$0xf]
    %v174 = vld [vmem:[#allocation5 + $0x8] sm:$0xf]
    %v175 = vld [vmem:[#allocation5 + $0xc] sm:$0xf]
    %v176 = vld [vmem:[#allocation5 + $0x10] sm:$0xf]
    %v177 = vld [vmem:[#allocation5 + $0x14] sm:$0xf]
    %v178 = vld [vmem:[#allocation5 + $0x18] sm:$0xf]
    %v179 = vld [vmem:[#allocation5 + $0x1c] sm:$0xf]
    %v180 = vld [vmem:[#allocation5 + $0x20] sm:$0xf]
    %v181 = vld [vmem:[#allocation5 + $0x24] sm:$0xf]
    %v182 = vld [vmem:[#allocation5 + $0x28] sm:$0xf]
    %v183 = vld [vmem:[#allocation5 + $0x2c] sm:$0xf]
    %v184 = vld [vmem:[#allocation5 + $0x30] sm:$0xf]
    %v185 = vld [vmem:[#allocation5 + $0x34] sm:$0xf]
    %v186 = vld [vmem:[#allocation5 + $0x38] sm:$0xf]
    %v187 = vld [vmem:[#allocation5 + $0x3c] sm:$0xf]
    %v188 = vld [vmem:[%s4 + $0x2] sm:$0x1]
    %v189 = vperm.slane %v188, 0
    %v206 = vunpack.c.l.b16 %v172
    %v207 = vunpack.c.l.b16 %v173
    %v208 = vunpack.c.l.b16 %v174
    %v209 = vunpack.c.l.b16 %v175
    %v210 = vunpack.c.l.b16 %v176
    %v211 = vunpack.c.l.b16 %v177
    %v212 = vunpack.c.l.b16 %v178
    %v213 = vunpack.c.l.b16 %v179
    %v214 = vunpack.c.l.b16 %v180
    %v215 = vunpack.c.l.b16 %v181
    %v216 = vunpack.c.l.b16 %v182
    %v217 = vunpack.c.l.b16 %v183
    %v218 = vunpack.c.l.b16 %v184
    %v219 = vunpack.c.l.b16 %v185
    %v220 = vunpack.c.l.b16 %v186
    %v221 = vunpack.c.l.b16 %v187
    %v222 = vpack.c.b16 %v207, %v206
    %v223 = vpack.c.b16 %v209, %v208
    %v224 = vpack.c.b16 %v211, %v210
    %v225 = vpack.c.b16 %v213, %v212
    %v226 = vpack.c.b16 %v215, %v214
    %v227 = vpack.c.b16 %v217, %v216
    %v228 = vpack.c.b16 %v219, %v218
    %v229 = vpack.c.b16 %v221, %v220
    %238 = vmatpush.bf16.msra.mxu0 %v229
    %239 = vmatpush.bf16.msra.mxu0 %v228
    %240 = vmatpush.bf16.msra.mxu0 %v227
    %241 = vmatpush.bf16.msra.mxu0 %v226
    %242 = vmatpush.bf16.msra.mxu0 %v225
    %243 = vmatpush.bf16.msra.mxu0 %v224
    %244 = vmatpush.bf16.msra.mxu0 %v223
    %245 = vmatpush.bf16.msra.mxu0 %v222
    %246 = vmatmul.bf16.gmra.mxu0 %v171
    %v247 = vpop.f32.mrf.mxu0
    %v248 = vadd.f32 %v189, %v247
    %v249 = vpop.f32.mrf.mxu0
    %v250 = vadd.f32 %v189, %v249
    %251 = vdwg.mxu0
    %252 = vst [vmem:[#allocation7] sm:$0xff] %v248
    %253 = vst [vmem:[#allocation7 + $0x8] sm:$0xff] %v250
    // Predicated region
    $region30: #{tpu_custom_call.1} parent=1 // pred_check
      _
    $region31: #{tpu_custom_call.1} parent=1 // pred_check_branch
      %255 = sbr.rel (0) target = $region33
    $region32: #{tpu_custom_call.1} parent=1 // pred_region
      %257 = vsyncadd [#allocation4], 0
      %s258 = sshll.u32 [#allocation7], 4
      %s259 = int_to_ptr.vmem [resolvable:$true] %s258
      %s260 = sshll.u32 %s5, 4
      %s261 = int_to_ptr.hbm [resolvable:$true] %s260
      %266 = dma.vmem_to_hbm [thread:$0]  %s259, 256, %s261, [#allocation4], 128, 128, 8
    $region33: #{tpu_custom_call.1} parent=1 // pred_fallthru
      _
    // Predicated region
    $region34: #{tpu_custom_call.1} parent=1 // pred_check
      _
    $region35: #{tpu_custom_call.1} parent=1 // pred_check_branch
      %268 = sbr.rel (0) target = $region37
    $region36: #{tpu_custom_call.1} parent=1 // pred_region
      %270 = dma.done [#allocation4], 256
    $region37: #{tpu_custom_call.1} parent=1 // pred_fallthru
      _
    %271 = vsyncpa [#allocation3], 1
    %272 = vsyncpa [#allocation6], 1
    %273 = vsyncpa [#allocation4], 1

</llo_original>
